<compile_context>
chip_gen: v7x
topology: tpu7x:2x2x1
jax: 0.10.0
libtpu: 0.0.40
codegen_flags: <defaults>
</compile_context>

<pallas_src>
import functools

import jax
import jax.numpy as jnp
from jax.experimental import pallas as pl
from jax.experimental.pallas import tpu as pltpu


# ------------------------------ Pallas kernel ------------------------------ #
def _rope_kernel(x_ref, cos_ref, sin_ref, o_ref, *, ro, rot_heads):
    """GPT-NeoX RoPE on a (1, Ts, NH, D) tile with a full-width unmasked store.

    cos_ref/sin_ref : (Ts, D) fp32, pre-expanded per lane:
        cos -> [cos, cos, 1...],  sin -> [-sin, sin, 0...]   (sign folded),
        tiled per segment when heads are lane-packed.
    ro        : rotary width of one segment (static).
    rot_heads : if not None, only heads [0, rot_heads) are rotated; others pass
                through via an in-kernel select (no slicing / concat).
    """
    x = x_ref[...]
    xf = x.astype(jnp.float32)
    d = x.shape[-1]
    dh = ro // 2
    last = xf.ndim - 1

    cos = cos_ref[...][None, :, None, :]
    sin = sin_ref[...][None, :, None, :]

    if ro == d:
        # [x1, x2] -> [x2, x1]: one XLU lane roll (d - dh == dh here).
        partner = pltpu.roll(xf, shift=dh, axis=last)
    else:
        # Partial rotary and/or lane-packed heads: per-segment half swap using
        # two rolls + one lane select.  Lanes where sin == 0 don't care which
        # roll they pick up, so the simple mask below is sufficient.
        lane = jax.lax.broadcasted_iota(jnp.int32, xf.shape, dimension=last)
        if d % ro == 0 and (ro & (ro - 1)) == 0:
            seg_lane = jnp.bitwise_and(lane, ro - 1)   # lane index within segment
        else:
            seg_lane = lane                            # single segment at front
        partner = jnp.where(seg_lane < dh,
                            pltpu.roll(xf, shift=d - dh, axis=last),
                            pltpu.roll(xf, shift=dh, axis=last))

    out = xf * cos + partner * sin

    if rot_heads is not None:
        head = jax.lax.broadcasted_iota(jnp.int32, xf.shape, dimension=last - 1)
        out = jnp.where(head < rot_heads, out, xf)

    o_ref[...] = out.astype(o_ref.dtype)


# ------------------------------- wrappers ---------------------------------- #
def _sublane_multiple(dtype):
    isz = jnp.dtype(dtype).itemsize
    return {4: 8, 2: 16, 1: 32}.get(isz, 8)


def _rope_pallas(x, cos_full, sin_full, *, ro, nh_block, rot_heads, alias):
    """x: (B, S, NH, D). Visits the first nh_block heads of every (b, seq-tile)
    block; if `alias`, unvisited heads pass through input/output aliasing."""
    B, S, NH, D = x.shape
    itemsize = jnp.dtype(x.dtype).itemsize
    row_bytes = nh_block * D * itemsize

    # ~8 MiB blocks (perf review): big enough to amortize per-step overhead on
    # v6e/v7x, small enough that 2x(in)+2x(out) blocks stay well under 48 MiB.
    target_bytes = 8 << 20
    st = int(min(S, max(1, target_bytes // max(row_bytes, 1))))
    if st < S:
        # seq is the 2nd-minor dim of the (Ts, D) cos/sin blocks -> keep it a
        # multiple of 8 (fp32 sublanes) unless it is the full extent.
        st = max(8, (st // 8) * 8)
        if st >= S:
            st = S
    grid = (pl.cdiv(S, st), B)          # seq outer, batch inner: cos/sin block
                                        # index constant across the inner loop
                                        # -> fetched once per seq tile.

    block_bytes = st * row_bytes
    cs_bytes = st * D * 4
    vmem_need = 4 * block_bytes + 4 * cs_bytes + (4 << 20)
    vmem_limit = int(min(max(vmem_need, 32 << 20), 48 << 20))

    x_spec = pl.BlockSpec((1, st, nh_block, D), lambda s, b: (b, s, 0, 0))
    cs_spec = pl.BlockSpec((st, D), lambda s, b: (s, 0))

    kernel = functools.partial(_rope_kernel, ro=ro, rot_heads=rot_heads)

    cost = pl.CostEstimate(
        flops=int(4 * B * S * nh_block * D),
        transcendentals=0,
        bytes_accessed=int(2 * B * S * nh_block * D * itemsize
                           + cos_full.nbytes + sin_full.nbytes),
    )

    return pl.pallas_call(
        kernel,
        out_shape=jax.ShapeDtypeStruct(x.shape, x.dtype),
        grid=grid,
        in_specs=[x_spec, cs_spec, cs_spec],
        out_specs=x_spec,
        # NOTE: for the alias path to avoid a defensive copy, callers should
        # donate the qkv buffer (jax.jit donate_argnums).  Correct either way.
        input_output_aliases={0: 0} if alias else {},
        compiler_params=pltpu.CompilerParams(
            dimension_semantics=("parallel", "parallel"),
            vmem_limit_bytes=vmem_limit,
        ),
        cost_estimate=cost,
    )(x, cos_full, sin_full)


def _rope_apply_heads(x, cos, sin, num_rot_heads):
    """x: (B, S, NH, D); cos, sin: (S, rotary_dim // 2).
    Returns x with the first num_rot_heads heads rotated, the rest untouched."""
    B, S, NH, D = x.shape
    Dh = cos.shape[-1]
    ro = 2 * Dh
    assert ro <= D and ro % 2 == 0
    assert cos.shape == (S, Dh) and sin.shape == (S, Dh)

    # Lane-pack small heads (e.g. D=64 full rotary) so stores stay lane-dense.
    pf = 1
    if ro == D and D < 128 and 128 % D == 0:
        p = 128 // D
        if NH % p == 0 and num_rot_heads % p == 0:
            pf = p
    NHv = NH // pf
    nh_rot_v = num_rot_heads // pf
    Dv = D * pf
    x_view = x if pf == 1 else x.reshape(B, S, NHv, Dv)

    # Full-width fp32 cos/sin with signs folded (kernel math stays fp32).
    cos32 = cos.astype(jnp.float32)
    sin32 = sin.astype(jnp.float32)
    cos_seg = jnp.concatenate([cos32, cos32], axis=-1)       # (S, ro)
    sin_seg = jnp.concatenate([-sin32, sin32], axis=-1)      # (S, ro)
    if ro < D:
        cos_seg = jnp.concatenate(
            [cos_seg, jnp.ones((S, D - ro), jnp.float32)], axis=-1)
        sin_seg = jnp.concatenate(
            [sin_seg, jnp.zeros((S, D - ro), jnp.float32)], axis=-1)
    if pf > 1:
        cos_full = jnp.tile(cos_seg, (1, pf))
        sin_full = jnp.tile(sin_seg, (1, pf))
    else:
        cos_full, sin_full = cos_seg, sin_seg

    sub = _sublane_multiple(x.dtype)
    aligned = (nh_rot_v == NHv) or (nh_rot_v % sub == 0)
    if aligned:
        # Visit only the rotated heads; if there are pass-through (v) heads they
        # flow through the alias and never move through the kernel.
        out = _rope_pallas(x_view, cos_full, sin_full, ro=ro, nh_block=nh_rot_v,
                           rot_heads=None, alias=(nh_rot_v < NHv))
    else:
        # Unaligned head split: one masked pass over all heads (single read +
        # single write of everything; no slice + concat round-trip).
        out = _rope_pallas(x_view, cos_full, sin_full, ro=ro, nh_block=NHv,
                           rot_heads=nh_rot_v, alias=False)
    return out if pf == 1 else out.reshape(B, S, NH, D)


# --------------------------- Module equivalent ----------------------------- #
class RotaryEmbeddingPallas:
    """JAX / Pallas port of vortex RotaryEmbedding (scale_base=None, non-interleaved)."""

    def __init__(self, dim, base=10000.0, interleaved=False, scale_base=None,
                 pos_idx_in_fp32=True):
        assert not interleaved, "interleaved not implemented"  # TODO(synk): GPT-J interleaved variant
        assert scale_base is None, "XPos not implemented"      # TODO(synk): XPos scale / cos_k, sin_k caches
        self.dim = dim
        self.base = float(base)
        self.pos_idx_in_fp32 = pos_idx_in_fp32
        self.interleaved = interleaved
        self.scale_base = scale_base
        self.inv_freq = 1.0 / (self.base ** (
            jnp.arange(0, dim, 2, dtype=jnp.float32) / dim))
        self._seq_len_cached = 0
        self._cos_cached = None
        self._sin_cached = None

    def _update_cos_sin_cache(self, seqlen, dtype):
        if (seqlen > self._seq_len_cached or self._cos_cached is None
                or self._cos_cached.dtype != dtype):
            self._seq_len_cached = seqlen
            t = jnp.arange(seqlen, dtype=jnp.float32 if self.pos_idx_in_fp32
                           else self.inv_freq.dtype)
            freqs = jnp.outer(t, self.inv_freq)            # (seqlen, dim/2)
            # Matches the torch module: cache in the activation dtype (the
            # kernel re-expands to fp32 for the actual math).
            self._cos_cached = jnp.cos(freqs).astype(dtype)
            self._sin_cached = jnp.sin(freqs).astype(dtype)

    def __call__(self, qkv, kv=None, seqlen_offset=0, max_seqlen=None,
                 num_heads_q=None):
        """qkv: (B,S,3,H,D) or (B,S,num_heads_q+2*num_heads_k,D) if kv is None,
        else q of shape (B,S,H,D).  kv: (B,S,2,H,D) or None."""
        # TODO(synk): per-batch tensor seqlen_offsets (inference KV-cache path)
        assert isinstance(seqlen_offset, int)
        seqlen = qkv.shape[1]
        if max_seqlen is not None:
            self._update_cos_sin_cache(max_seqlen, qkv.dtype)
        else:
            self._update_cos_sin_cache(seqlen + seqlen_offset, qkv.dtype)
        cos = self._cos_cached[seqlen_offset:seqlen_offset + seqlen]
        sin = self._sin_cached[seqlen_offset:seqlen_offset + seqlen]

        if kv is None:
            if qkv.ndim == 5:
                B, S, three, H, D = qkv.shape
                assert three == 3
                flat = qkv.reshape(B, S, 3 * H, D)
                out = _rope_apply_heads(flat, cos, sin, num_rot_heads=2 * H)
                return out.reshape(B, S, 3, H, D)
            else:                                   # MQA / GQA packed layout
                assert num_heads_q is not None
                B, S, NH, D = qkv.shape
                nh_k = (NH - num_heads_q) // 2
                assert NH == num_heads_q + 2 * nh_k
                return _rope_apply_heads(qkv, cos, sin,
                                         num_rot_heads=num_heads_q + nh_k)
        else:
            # q path (rotate all heads) + k-only path of kv (scale None => same cos/sin)
            B, S, H, D = qkv.shape
            q_out = _rope_apply_heads(qkv, cos, sin, num_rot_heads=H)
            Bk, Sk, two, Hk, Dk = kv.shape
            assert two == 2
            kv_flat = kv.reshape(Bk, Sk, 2 * Hk, Dk)
            kv_out = _rope_apply_heads(kv_flat, cos, sin, num_rot_heads=Hk)
            return q_out, kv_out.reshape(Bk, Sk, 2, Hk, Dk)


# ------------------------------- reference --------------------------------- #
def _rotate_half_ref(x):
    d = x.shape[-1] // 2
    return jnp.concatenate([-x[..., d:], x[..., :d]], axis=-1)


def _apply_rotary_ref(x, cos, sin):
    ro = cos.shape[-1] * 2
    cos_r = jnp.concatenate([cos, cos], axis=-1)[:, None, :]   # (S, 1, ro)
    sin_r = jnp.concatenate([sin, sin], axis=-1)[:, None, :]
    xr = x[..., :ro]
    out = xr * cos_r + _rotate_half_ref(xr) * sin_r
    return jnp.concatenate([out, x[..., ro:]], axis=-1)


def _rotary_forward_ref(qkv, cos, sin):
    B, S, _, H, D = qkv.shape
    qk = qkv[:, :, :2].reshape(B, S, 2 * H, D)
    qk_out = _apply_rotary_ref(qk, cos, sin).reshape(B, S, 2, H, D)
    return jnp.concatenate([qk_out, qkv[:, :, 2:]], axis=2)


# --------------------------------- main ------------------------------------ #
if __name__ == "__main__":
    key = jax.random.PRNGKey(0)
    k1, k2, k3, k4 = jax.random.split(key, 4)

    # case 1: full rotary (rotary_dim == headdim == 128) -> single-roll kernel,
    # aliased v pass-through (only q+k heads move through the kernel).
    B, S, H, D = 2, 16, 4, 128
    qkv = jax.random.normal(k1, (B, S, 3, H, D), dtype=jnp.float32)
    rope = RotaryEmbeddingPallas(dim=D, base=10000.0)
    out = jax.block_until_ready(rope(qkv))
    cos = rope._cos_cached[:S]
    sin = rope._sin_cached[:S]
    ref = _rotary_forward_ref(qkv, cos, sin)
    assert out.shape == qkv.shape and out.dtype == qkv.dtype
    assert float(jnp.max(jnp.abs(out - ref))) < 1e-4

    # case 2: partial rotary (rotary_dim = 64 < headdim = 128) -> two-roll +
    # lane-select path, still one full-width store.
    rope2 = RotaryEmbeddingPallas(dim=64, base=10000.0)
    out2 = jax.block_until_ready(rope2(qkv))
    ref2 = _rotary_forward_ref(qkv, rope2._cos_cached[:S], rope2._sin_cached[:S])
    assert float(jnp.max(jnp.abs(out2 - ref2))) < 1e-4

    # case 3: (q, kv) path; kv exercises the masked (non-sublane-aligned) head path.
    q = jax.random.normal(k2, (B, S, H, D), dtype=jnp.float32)
    kv = jax.random.normal(k3, (B, S, 2, H, D), dtype=jnp.float32)
    q_out, kv_out = rope(q, kv=kv)
    q_out = jax.block_until_ready(q_out)
    kv_out = jax.block_until_ready(kv_out)
    q_ref = _apply_rotary_ref(q, cos, sin)
    k_ref = _apply_rotary_ref(kv[:, :, 0], cos, sin)
    assert float(jnp.max(jnp.abs(q_out - q_ref))) < 1e-4
    assert float(jnp.max(jnp.abs(kv_out[:, :, 0] - k_ref))) < 1e-4
    assert float(jnp.max(jnp.abs(kv_out[:, :, 1] - kv[:, :, 1]))) < 1e-6

    # case 4: head_dim = 64 full rotary -> two heads lane-packed per 128-lane row.
    D64 = 64
    qkv64 = jax.random.normal(k4, (B, S, 3, H, D64), dtype=jnp.float32)
    rope3 = RotaryEmbeddingPallas(dim=D64, base=10000.0)
    out3 = jax.block_until_ready(rope3(qkv64))
    ref3 = _rotary_forward_ref(qkv64, rope3._cos_cached[:S], rope3._sin_cached[:S])
    assert float(jnp.max(jnp.abs(out3 - ref3))) < 1e-4

    print("KERNEL_OK")
</pallas_src>

<mosaic_0001>
module attributes {stable_mosaic.version = 11 : i64} {
  func.func @_rope_kernel(%arg0: i32, %arg1: i32, %arg2: memref<1x16x8x128xf32, #tpu.memory_space<vmem>>, %arg3: memref<16x128xf32, #tpu.memory_space<vmem>>, %arg4: memref<16x128xf32, #tpu.memory_space<vmem>>, %arg5: memref<1x16x8x128xf32, #tpu.memory_space<vmem>>) attributes {dimension_semantics = [#tpu.dimension_semantics<parallel>, #tpu.dimension_semantics<parallel>], iteration_bounds = array<i64: 1, 2>, scalar_prefetch = 0 : i64, scratch_operands = 0 : i64, tpu.core_type = #tpu.core_type<tc>, window_params = [{transform_indices = @transform_0, window_bounds = array<i64: 1, 16, 8, 128>}, {transform_indices = @transform_1, window_bounds = array<i64: 16, 128>}, {transform_indices = @transform_2, window_bounds = array<i64: 16, 128>}, {transform_indices = @transform_3, window_bounds = array<i64: 1, 16, 8, 128>}]} {
    %c0 = arith.constant 0 : index
    %c0_0 = arith.constant 0 : index
    %c0_1 = arith.constant 0 : index
    %c0_2 = arith.constant 0 : index
    %0 = vector.load %arg2[%c0, %c0_0, %c0_1, %c0_2] : memref<1x16x8x128xf32, #tpu.memory_space<vmem>>, vector<1x16x8x128xf32>
    %c0_3 = arith.constant 0 : index
    %c0_4 = arith.constant 0 : index
    %1 = vector.load %arg3[%c0_3, %c0_4] : memref<16x128xf32, #tpu.memory_space<vmem>>, vector<16x128xf32>
    %2 = vector.shape_cast %1 : vector<16x128xf32> to vector<1x16x1x128xf32>
    %c0_5 = arith.constant 0 : index
    %c0_6 = arith.constant 0 : index
    %3 = vector.load %arg4[%c0_5, %c0_6] : memref<16x128xf32, #tpu.memory_space<vmem>>, vector<16x128xf32>
    %4 = vector.shape_cast %3 : vector<16x128xf32> to vector<1x16x1x128xf32>
    %c64_i32 = arith.constant 64 : i32
    %5 = tpu.dynamic_rotate %0 by %c64_i32 dim 3 : vector<1x16x8x128xf32>, i32 -> vector<1x16x8x128xf32>
    %6 = vector.broadcast %2 : vector<1x16x1x128xf32> to vector<1x16x8x128xf32>
    %7 = arith.mulf %0, %6 : vector<1x16x8x128xf32>
    %8 = vector.broadcast %4 : vector<1x16x1x128xf32> to vector<1x16x8x128xf32>
    %9 = arith.mulf %5, %8 : vector<1x16x8x128xf32>
    %10 = arith.addf %7, %9 : vector<1x16x8x128xf32>
    %c0_7 = arith.constant 0 : index
    %c0_8 = arith.constant 0 : index
    %c0_9 = arith.constant 0 : index
    %c0_10 = arith.constant 0 : index
    %11 = vector.load %arg5[%c0_7, %c0_8, %c0_9, %c0_10] : memref<1x16x8x128xf32, #tpu.memory_space<vmem>>, vector<1x16x8x128xf32>
    tpu.vector_store %arg5[%c0_7, %c0_8, %c0_9, %c0_10], %10 {strides = array<i32>} : memref<1x16x8x128xf32, #tpu.memory_space<vmem>>, vector<1x16x8x128xf32>,
    return
  }
  func.func @transform_0(%arg0: i32, %arg1: i32) -> (i32, i32, i32, i32) {
    %c0_i32 = arith.constant 0 : i32
    %c0_i32_0 = arith.constant 0 : i32
    %c0_i32_1 = arith.constant 0 : i32
    return %arg1, %arg0, %c0_i32, %c0_i32_0 : i32, i32, i32, i32
  }
  func.func @transform_1(%arg0: i32, %arg1: i32) -> (i32, i32) {
    %c0_i32 = arith.constant 0 : i32
    %c0_i32_0 = arith.constant 0 : i32
    return %arg0, %c0_i32 : i32, i32
  }
  func.func @transform_2(%arg0: i32, %arg1: i32) -> (i32, i32) {
    %c0_i32 = arith.constant 0 : i32
    %c0_i32_0 = arith.constant 0 : i32
    return %arg0, %c0_i32 : i32, i32
  }
  func.func @transform_3(%arg0: i32, %arg1: i32) -> (i32, i32, i32, i32) {
    %c0_i32 = arith.constant 0 : i32
    %c0_i32_0 = arith.constant 0 : i32
    %c0_i32_1 = arith.constant 0 : i32
    return %arg1, %arg0, %c0_i32, %c0_i32_0 : i32, i32, i32, i32
  }
}

</mosaic_0001>

<llo_original>
// kernel: tpu_custom_call.1
$region0: #{tpu_custom_call.1}
  #allocation0 [shape = 'u32[]', space=smem, size = 0x4, offset = 0x4, fixed_abs, tag = 'smem constant byte address 0x4 - core index']
  #allocation1 [shape = 'u32[144,128]{1,0:T(1,128)}', space=vmem, size = 0x12000, scoped, tag = 'internal scratch']
  %s0 = inlined_call_operand.vmem [shape: f32[2,16,12,128], index: 0, kind: input, shape index: {}, may-alias: {0,3}]
  %s1 = inlined_call_operand.vmem [shape: f32[16,128], index: 1, kind: input, shape index: {}]
  %s2 = inlined_call_operand.vmem [shape: f32[16,128], index: 2, kind: input, shape index: {}]
  %s3 = inlined_call_operand.vmem [shape: f32[2,16,12,128], index: 3, kind: output, shape index: {}, may-alias: {0,3}]
  %s4 = sld [smem:[#allocation0]]
  $region117: #{tpu_custom_call.1} parent=0
    _
  %s6 = ssub.s32 1, %s4
  %s7 = scalar_select 0, %s6, %s4
  $region1: #{tpu_custom_call.1} parent=0
    #allocation2 [shape = 'u8[131072]{0}', space=vmem, size = 0x20000, scoped, tag = 'input window, operand 0']
    #allocation3 [shape = 'u8[131072]{0}', space=vmem, size = 0x20000, scoped, tag = 'output window, operand 0']
    loop: start=0, step=1, limit=4
    $region2: #{tpu_custom_call.1} parent=1 // loop_pre_header
      _
    $region3: #{tpu_custom_call.1} parent=1 // loop_header
      %s9 = sphi 0, %s13
      %p10 = scmp.ge.s32.totalorder %s9, 4
      %s16 = sphi 0, %s28
      %s17 = sphi 0, %s24
      %s18 = sphi 0, %s16
      %s19 = sphi 0, %s17
      %s20 = sphi 0, %s18
      %s21 = sphi 0, %s19
      %s33 = sphi 0, %s35
      %s36 = sphi 0, %s33
      %s37 = sphi 0, %s36
      %s53 = sphi 0, %s37
      %s59 = sphi 0, %s61
      %s62 = sphi 0, %s59
      %s63 = sphi 0, %s62
      %s79 = sphi 0, %s63
      %s85 = sphi 0, %s87
      %s88 = sphi 0, %s85
      %s89 = sphi 0, %s88
      %s105 = sphi 0, %s89
      %s113 = sphi 0, %s115
      %s116 = sphi 0, %s113
      %s117 = sphi 0, %s116
      %s133 = sphi 0, %s117
    $region4: #{tpu_custom_call.1} parent=1 // loop_header_branch
      %12 = sbr.rel (%p10) target = $region8
    $region5: #{tpu_custom_call.1} parent=1 // loop_body
      %s14 = ssub.s32 %s9, 1
      %s15 = ssub.s32 %s9, 2
      %s22 = sadd.s32 1, %s17
      %p23 = scmp.ge.s32.totalorder %s22, 2
      %s24 = scalar_select %p23, 0, %s22
      %s25 = sadd.s32 1, %s16
      %s26 = scalar_select %p23, %s25, %s16
      %p27 = scmp.ge.s32.totalorder %s26, 1
      %s28 = scalar_select %p27, 0, %s26
      %s29 = ssub.s32 %s17, %s24
      %s30 = ssub.s32 %s16, %s28
      %s31 = sor.u32 %s29, %s30
      %p32 = scmp.eq.s32.totalorder %s31, 0
      %s34 = sadd.s32 %s33, 1
      %s35 = scalar_select %p32, %s33, %s34
      %p38 = pneg %p32
      %p39 = scmp.eq.s32.totalorder %s9, 1
      %p40 = por %p38, %p39
      %p41 = scmp.ne.s32.totalorder %s33, %s36
      %p42 = scmp.eq.s32.totalorder %s9, 0
      %p43 = por %p41, %p42
      %p44 = scmp.ne.s32.totalorder %s33, %s36
      %p45 = scmp.eq.s32.totalorder %s14, 1
      %p46 = por %p44, %p45
      %p47 = scmp.ne.s32.totalorder %s36, %s37
      %p48 = scmp.eq.s32.totalorder %s14, 0
      %p49 = por %p47, %p48
      %p50 = scmp.ne.s32.totalorder %s36, %s37
      %p51 = scmp.eq.s32.totalorder %s15, 1
      %p52 = por %p50, %p51
      %p54 = scmp.ne.s32.totalorder %s37, %s53
      %p55 = scmp.eq.s32.totalorder %s15, 0
      %p56 = por %p54, %p55
      %s57 = ssub.s32 %s16, %s28
      %p58 = scmp.eq.s32.totalorder %s57, 0
      %s60 = sadd.s32 %s59, 1
      %s61 = scalar_select %p58, %s59, %s60
      %p64 = pneg %p58
      %p65 = scmp.eq.s32.totalorder %s9, 1
      %p66 = por %p64, %p65
      %p67 = scmp.ne.s32.totalorder %s59, %s62
      %p68 = scmp.eq.s32.totalorder %s9, 0
      %p69 = por %p67, %p68
      %p70 = scmp.ne.s32.totalorder %s59, %s62
      %p71 = scmp.eq.s32.totalorder %s14, 1
      %p72 = por %p70, %p71
      %p73 = scmp.ne.s32.totalorder %s62, %s63
      %p74 = scmp.eq.s32.totalorder %s14, 0
      %p75 = por %p73, %p74
      %p76 = scmp.ne.s32.totalorder %s62, %s63
      %p77 = scmp.eq.s32.totalorder %s15, 1
      %p78 = por %p76, %p77
      %p80 = scmp.ne.s32.totalorder %s63, %s79
      %p81 = scmp.eq.s32.totalorder %s15, 0
      %p82 = por %p80, %p81
      %s83 = ssub.s32 %s16, %s28
      %p84 = scmp.eq.s32.totalorder %s83, 0
      %s86 = sadd.s32 %s85, 1
      %s87 = scalar_select %p84, %s85, %s86
      %p90 = pneg %p84
      %p91 = scmp.eq.s32.totalorder %s9, 1
      %p92 = por %p90, %p91
      %p93 = scmp.ne.s32.totalorder %s85, %s88
      %p94 = scmp.eq.s32.totalorder %s9, 0
      %p95 = por %p93, %p94
      %p96 = scmp.ne.s32.totalorder %s85, %s88
      %p97 = scmp.eq.s32.totalorder %s14, 1
      %p98 = por %p96, %p97
      %p99 = scmp.ne.s32.totalorder %s88, %s89
      %p100 = scmp.eq.s32.totalorder %s14, 0
      %p101 = por %p99, %p100
      %p102 = scmp.ne.s32.totalorder %s88, %s89
      %p103 = scmp.eq.s32.totalorder %s15, 1
      %p104 = por %p102, %p103
      %p106 = scmp.ne.s32.totalorder %s89, %s105
      %p107 = scmp.eq.s32.totalorder %s15, 0
      %p108 = por %p106, %p107
      %s109 = ssub.s32 %s17, %s24
      %s110 = ssub.s32 %s16, %s28
      %s111 = sor.u32 %s109, %s110
      %p112 = scmp.eq.s32.totalorder %s111, 0
      %s114 = sadd.s32 %s113, 1
      %s115 = scalar_select %p112, %s113, %s114
      %p118 = pneg %p112
      %p119 = scmp.eq.s32.totalorder %s9, 1
      %p120 = por %p118, %p119
      %p121 = scmp.ne.s32.totalorder %s113, %s116
      %p122 = scmp.eq.s32.totalorder %s9, 0
      %p123 = por %p121, %p122
      %p124 = scmp.ne.s32.totalorder %s113, %s116
      %p125 = scmp.eq.s32.totalorder %s14, 1
      %p126 = por %p124, %p125
      %p127 = scmp.ne.s32.totalorder %s116, %s117
      %p128 = scmp.eq.s32.totalorder %s14, 0
      %p129 = por %p127, %p128
      %p130 = scmp.ne.s32.totalorder %s116, %s117
      %p131 = scmp.eq.s32.totalorder %s15, 1
      %p132 = por %p130, %p131
      %p134 = scmp.ne.s32.totalorder %s117, %s133
      %p135 = scmp.eq.s32.totalorder %s15, 0
      %p136 = por %p134, %p135
      %p137 = scmp.le.s32.totalorder 1, %s9
      %p138 = scmp.lt.s32.totalorder %s9, 3
      %p139 = pnand %p137, %p138
      %p140 = pneg %p139
      // Predicated region
      $region9: #{tpu_custom_call.1} parent=5 // pred_check
        _
      $region10: #{tpu_custom_call.1} parent=5 // pred_check_branch
        %142 = sbr.rel (%p139) target = $region12
      $region11: #{tpu_custom_call.1} parent=5 // pred_region
        %s143 = ssub.s32 %s9, 1
        // Predicated region
        $region13: #{tpu_custom_call.1} parent=11 // pred_check
          %p144 = pneg %p75
        $region14: #{tpu_custom_call.1} parent=11 // pred_check_branch
          %146 = sbr.rel (%p144) target = $region16
        $region15: #{tpu_custom_call.1} parent=11 // pred_region
          %s147 = smul.u32 2, %s18
          %p148 = scmp.lt.s32.totalorder %s147, 1
          %s149 = scalar_select %p148, %s147, 1
          %s150 = smul.addr %s149, 8
          %s151 = scalar_lea.vmem %s1, %s150
          %s152 = smul.u32 2, %s18
        $region16: #{tpu_custom_call.1} parent=11 // pred_fallthru
          _
        // Predicated region
        $region17: #{tpu_custom_call.1} parent=11 // pred_check
          %p153 = pneg %p101
        $region18: #{tpu_custom_call.1} parent=11 // pred_check_branch
          %155 = sbr.rel (%p153) target = $region20
        $region19: #{tpu_custom_call.1} parent=11 // pred_region
          %s156 = smul.u32 2, %s18
          %p157 = scmp.lt.s32.totalorder %s156, 1
          %s158 = scalar_select %p157, %s156, 1
          %s159 = smul.addr %s158, 8
          %s160 = scalar_lea.vmem %s2, %s159
          %s161 = smul.u32 2, %s18
        $region20: #{tpu_custom_call.1} parent=11 // pred_fallthru
          _
      $region12: #{tpu_custom_call.1} parent=5 // pred_fallthru
        _
      %p162 = scmp.lt.s32.totalorder %s9, 2
      // Predicated region
      $region21: #{tpu_custom_call.1} parent=5 // pred_check
        %p163 = pneg %p162
      $region22: #{tpu_custom_call.1} parent=5 // pred_check_branch
        %165 = sbr.rel (%p163) target = $region24
      $region23: #{tpu_custom_call.1} parent=5 // pred_region
        // Predicated region
        $region25: #{tpu_custom_call.1} parent=23 // pred_check
          %p166 = pneg %p43
        $region26: #{tpu_custom_call.1} parent=23 // pred_check_branch
          %168 = sbr.rel (%p166) target = $region28
        $region27: #{tpu_custom_call.1} parent=23 // pred_region
          %s169 = sand.u32 %s33, 1
          %s170 = sand.u32 %s33, 1
          %s171 = smul.addr %s170, 128
          %s172 = scalar_lea.vmem [#allocation2], %s171
          %s173 = smul.u32 16, %s16
          %s174 = smul.addr %s173, 2
          %s175 = smul.addr %s17, 32
          %s176 = sadd.s32 %s174, %s175
          %s177 = smul.addr %s176, 8
          %s178 = scalar_lea.vmem %s0, %s177
          // Predicated region
          $region29: #{tpu_custom_call.1} parent=27 // pred_check
            _
          $region30: #{tpu_custom_call.1} parent=27 // pred_check_branch
            %180 = sbr.rel (0) target = $region32
          $region31: #{tpu_custom_call.1} parent=27 // pred_region
            // Predicated region
            $region33: #{tpu_custom_call.1} parent=31 // pred_check
              _
            $region34: #{tpu_custom_call.1} parent=31 // pred_check_branch
              %182 = sbr.rel (0) target = $region36
            $region35: #{tpu_custom_call.1} parent=31 // pred_region
              // Predicated region
              $region48: #{tpu_custom_call.1} parent=35 // pred_check
                _
              $region49: #{tpu_custom_call.1} parent=35 // pred_check_branch
                %227 = sbr.rel (0) target = $region51
              $region50: #{tpu_custom_call.1} parent=35 // pred_region
                loop: start=0, step=1, limit=1
                $region52: #{tpu_custom_call.1} parent=50 // loop_pre_header
                  _
                $region53: #{tpu_custom_call.1} parent=50 // loop_header
                  %s229 = sphi 0, %s233
                  %p230 = scmp.ge.s32.totalorder %s229, 1
                  %s234 = sphi %s178, %s178
                  %s235 = sphi %s172, %s172
                $region54: #{tpu_custom_call.1} parent=50 // loop_header_branch
                  %232 = sbr.rel (%p230) target = $region58
                $region55: #{tpu_custom_call.1} parent=50 // loop_body
                  %v236 = vld [vmem:[%s234] sm:$0xff]
                  %237 = vst [vmem:[%s235] sm:$0xff] %v236
                  %v238 = vld [vmem:[%s234 + $0x10] sm:$0xff]
                  %239 = vst [vmem:[%s235 + $0x8] sm:$0xff] %v238
                  %v240 = vld [vmem:[%s234 + $0x20] sm:$0xff]
                  %241 = vst [vmem:[%s235 + $0x10] sm:$0xff] %v240
                  %v242 = vld [vmem:[%s234 + $0x30] sm:$0xff]
                  %243 = vst [vmem:[%s235 + $0x18] sm:$0xff] %v242
                  %v244 = vld [vmem:[%s234 + $0x40] sm:$0xff]
                  %245 = vst [vmem:[%s235 + $0x20] sm:$0xff] %v244
                  %v246 = vld [vmem:[%s234 + $0x50] sm:$0xff]
                  %247 = vst [vmem:[%s235 + $0x28] sm:$0xff] %v246
                  %v248 = vld [vmem:[%s234 + $0x60] sm:$0xff]
                  %249 = vst [vmem:[%s235 + $0x30] sm:$0xff] %v248
                  %v250 = vld [vmem:[%s234 + $0x70] sm:$0xff]
                  %251 = vst [vmem:[%s235 + $0x38] sm:$0xff] %v250
                  %v252 = vld [vmem:[%s234 + $0x80] sm:$0xff]
                  %253 = vst [vmem:[%s235 + $0x40] sm:$0xff] %v252
                  %v254 = vld [vmem:[%s234 + $0x90] sm:$0xff]
                  %255 = vst [vmem:[%s235 + $0x48] sm:$0xff] %v254
                  %v256 = vld [vmem:[%s234 + $0xa0] sm:$0xff]
                  %257 = vst [vmem:[%s235 + $0x50] sm:$0xff] %v256
                  %v258 = vld [vmem:[%s234 + $0xb0] sm:$0xff]
                  %259 = vst [vmem:[%s235 + $0x58] sm:$0xff] %v258
                  %v260 = vld [vmem:[%s234 + $0xc0] sm:$0xff]
                  %261 = vst [vmem:[%s235 + $0x60] sm:$0xff] %v260
                  %v262 = vld [vmem:[%s234 + $0xd0] sm:$0xff]
                  %263 = vst [vmem:[%s235 + $0x68] sm:$0xff] %v262
                  %v264 = vld [vmem:[%s234 + $0xe0] sm:$0xff]
                  %265 = vst [vmem:[%s235 + $0x70] sm:$0xff] %v264
                  %v266 = vld [vmem:[%s234 + $0xf0] sm:$0xff]
                  %267 = vst [vmem:[%s235 + $0x78] sm:$0xff] %v266
                $region56: #{tpu_custom_call.1} parent=50 // loop_footer
                  %s233 = sadd.s32 1, %s229
                $region57: #{tpu_custom_call.1} parent=50 // loop_footer_branch
                  %228 = sbr.rel target = $region53
                $region58: #{tpu_custom_call.1} parent=50 // loop_exit
                  _
              $region51: #{tpu_custom_call.1} parent=35 // pred_fallthru
                _
              // Predicated region
              $region59: #{tpu_custom_call.1} parent=35 // pred_check
                _
              $region60: #{tpu_custom_call.1} parent=35 // pred_check_branch
                %269 = sbr.rel target = $region62
              $region61: #{tpu_custom_call.1} parent=35 // pred_region
                _
              $region62: #{tpu_custom_call.1} parent=35 // pred_fallthru
                _
            $region36: #{tpu_custom_call.1} parent=31 // pred_fallthru
              _
            // Predicated region
            $region37: #{tpu_custom_call.1} parent=31 // pred_check
              _
            $region38: #{tpu_custom_call.1} parent=31 // pred_check_branch
              %184 = sbr.rel target = $region40
            $region39: #{tpu_custom_call.1} parent=31 // pred_region
              loop: start=0, step=1, limit=1
              $region41: #{tpu_custom_call.1} parent=39 // loop_pre_header
                _
              $region42: #{tpu_custom_call.1} parent=39 // loop_header
                %s187 = sphi 0, %s191
                %p188 = scmp.ge.s32.totalorder %s187, 1
                %s192 = sphi %s178, %s178
                %s193 = sphi %s172, %s172
              $region43: #{tpu_custom_call.1} parent=39 // loop_header_branch
                %190 = sbr.rel (%p188) target = $region47
              $region44: #{tpu_custom_call.1} parent=39 // loop_body
                %v194 = vld [vmem:[%s192] sm:$0xff]
                %195 = vst [vmem:[%s193] sm:$0xff] %v194
                %v196 = vld [vmem:[%s192 + $0x10] sm:$0xff]
                %197 = vst [vmem:[%s193 + $0x8] sm:$0xff] %v196
                %v198 = vld [vmem:[%s192 + $0x20] sm:$0xff]
                %199 = vst [vmem:[%s193 + $0x10] sm:$0xff] %v198
                %v200 = vld [vmem:[%s192 + $0x30] sm:$0xff]
                %201 = vst [vmem:[%s193 + $0x18] sm:$0xff] %v200
                %v202 = vld [vmem:[%s192 + $0x40] sm:$0xff]
                %203 = vst [vmem:[%s193 + $0x20] sm:$0xff] %v202
                %v204 = vld [vmem:[%s192 + $0x50] sm:$0xff]
                %205 = vst [vmem:[%s193 + $0x28] sm:$0xff] %v204
                %v206 = vld [vmem:[%s192 + $0x60] sm:$0xff]
                %207 = vst [vmem:[%s193 + $0x30] sm:$0xff] %v206
                %v208 = vld [vmem:[%s192 + $0x70] sm:$0xff]
                %209 = vst [vmem:[%s193 + $0x38] sm:$0xff] %v208
                %v210 = vld [vmem:[%s192 + $0x80] sm:$0xff]
                %211 = vst [vmem:[%s193 + $0x40] sm:$0xff] %v210
                %v212 = vld [vmem:[%s192 + $0x90] sm:$0xff]
                %213 = vst [vmem:[%s193 + $0x48] sm:$0xff] %v212
                %v214 = vld [vmem:[%s192 + $0xa0] sm:$0xff]
                %215 = vst [vmem:[%s193 + $0x50] sm:$0xff] %v214
                %v216 = vld [vmem:[%s192 + $0xb0] sm:$0xff]
                %217 = vst [vmem:[%s193 + $0x58] sm:$0xff] %v216
                %v218 = vld [vmem:[%s192 + $0xc0] sm:$0xff]
                %219 = vst [vmem:[%s193 + $0x60] sm:$0xff] %v218
                %v220 = vld [vmem:[%s192 + $0xd0] sm:$0xff]
                %221 = vst [vmem:[%s193 + $0x68] sm:$0xff] %v220
                %v222 = vld [vmem:[%s192 + $0xe0] sm:$0xff]
                %223 = vst [vmem:[%s193 + $0x70] sm:$0xff] %v222
                %v224 = vld [vmem:[%s192 + $0xf0] sm:$0xff]
                %225 = vst [vmem:[%s193 + $0x78] sm:$0xff] %v224
              $region45: #{tpu_custom_call.1} parent=39 // loop_footer
                %s191 = sadd.s32 1, %s187
              $region46: #{tpu_custom_call.1} parent=39 // loop_footer_branch
                %186 = sbr.rel target = $region42
              $region47: #{tpu_custom_call.1} parent=39 // loop_exit
                _
            $region40: #{tpu_custom_call.1} parent=31 // pred_fallthru
              _
          $region32: #{tpu_custom_call.1} parent=27 // pred_fallthru
            _
          %270 = vnop
        $region28: #{tpu_custom_call.1} parent=23 // pred_fallthru
          _
      $region24: #{tpu_custom_call.1} parent=5 // pred_fallthru
        _
      %p271 = scmp.le.s32.totalorder 1, %s9
      %p272 = scmp.lt.s32.totalorder %s9, 3
      %p273 = pnand %p271, %p272
      %p274 = pneg %p273
      // Predicated region
      $region63: #{tpu_custom_call.1} parent=5 // pred_check
        _
      $region64: #{tpu_custom_call.1} parent=5 // pred_check_branch
        %276 = sbr.rel (%p273) target = $region66
      $region65: #{tpu_custom_call.1} parent=5 // pred_region
        %s277 = ssub.s32 %s9, 1
        %s278 = sand.u32 %s36, 1
        %s279 = sand.u32 %s36, 1
        %s280 = smul.addr %s279, 128
        %s281 = scalar_lea.vmem [#allocation2], %s280
        // Predicated region
        $region67: #{tpu_custom_call.1} parent=65 // pred_check
          %p282 = pneg %p49
        $region68: #{tpu_custom_call.1} parent=65 // pred_check_branch
          %284 = sbr.rel (%p282) target = $region70
        $region69: #{tpu_custom_call.1} parent=65 // pred_region
          _
        $region70: #{tpu_custom_call.1} parent=65 // pred_fallthru
          _
        %s285 = sand.u32 %s36, 1
        %s286 = sand.u32 %s36, 1
        %s287 = smul.addr %s286, 128
        %s288 = scalar_lea.vmem [#allocation2], %s287
        %p289 = pneg %p49
        %p290 = pneg %p46
        %s291 = smul.u32 2, %s18
        %p292 = scmp.lt.s32.totalorder %s291, 1
        %s293 = scalar_select %p292, %s291, 1
        %s294 = smul.addr %s293, 8
        %s295 = scalar_lea.vmem %s1, %s294
        %p296 = pneg %p75
        %p297 = pneg %p72
        %s298 = smul.u32 2, %s18
        %p299 = scmp.lt.s32.totalorder %s298, 1
        %s300 = scalar_select %p299, %s298, 1
        %s301 = smul.addr %s300, 8
        %s302 = scalar_lea.vmem %s2, %s301
        %p303 = pneg %p101
        %p304 = pneg %p98
        %p305 = pneg %p129
        %p306 = pneg %p126
        %s307 = sand.u32 %s116, 1
        %s308 = sand.u32 %s116, 1
        %s309 = smul.addr %s308, 128
        %s310 = scalar_lea.vmem [#allocation3], %s309
        %s311 = smul.u32 16, %s18
        %s312 = smul.u32 2, %s18
        %p313 = scmp.lt.s32.totalorder %s312, 1
        %s314 = scalar_select %p313, %s312, 1
        %s315 = smul.addr %s314, 8
        %s316 = scalar_lea.vmem %s1, %s315
        %s317 = smul.u32 2, %s18
        %s318 = smul.u32 2, %s18
        %p319 = scmp.lt.s32.totalorder %s318, 1
        %s320 = scalar_select %p319, %s318, 1
        %s321 = smul.addr %s320, 8
        %s322 = scalar_lea.vmem %s2, %s321
        %s323 = smul.u32 2, %s18
        %s324 = smul.u32 16, %s18
        %v325 = vld [vmem:[%s281] sm:$0xff]
        %v326 = vld [vmem:[%s281 + $0x8] sm:$0xff]
        %v327 = vld [vmem:[%s281 + $0x10] sm:$0xff]
        %v328 = vld [vmem:[%s281 + $0x18] sm:$0xff]
        %v329 = vld [vmem:[%s281 + $0x20] sm:$0xff]
        %v330 = vld [vmem:[%s281 + $0x28] sm:$0xff]
        %v331 = vld [vmem:[%s281 + $0x30] sm:$0xff]
        %v332 = vld [vmem:[%s281 + $0x38] sm:$0xff]
        %v333 = vld [vmem:[%s281 + $0x40] sm:$0xff]
        %v334 = vld [vmem:[%s281 + $0x48] sm:$0xff]
        %v335 = vld [vmem:[%s281 + $0x50] sm:$0xff]
        %v336 = vld [vmem:[%s281 + $0x58] sm:$0xff]
        %v337 = vld [vmem:[%s281 + $0x60] sm:$0xff]
        %v338 = vld [vmem:[%s281 + $0x68] sm:$0xff]
        %v339 = vld [vmem:[%s281 + $0x70] sm:$0xff]
        %v340 = vld [vmem:[%s281 + $0x78] sm:$0xff]
        %v341 = vld [vmem:[%s316] sm:$0xff]
        %v342 = vld [vmem:[%s316 + $0x8] sm:$0xff]
        %v345 = vcombine.high %v341, %v341
        %v347 = vunpack.c.l.s4 1966171168
        %v348 = vunpack.c.0.s8 %v347
        %v349 = vlaneseq
        %v350 = vshrl.u32 %v349, 7
        %v351 = vsub.s32 %v348, %v350
        %v352 = vrot.slane %v341, %v351
        %v354 = vunpack.c.l.s4 1966171168
        %v355 = vunpack.c.0.s8 %v354
        %v356 = vlaneseq
        %v357 = vshrl.u32 %v356, 7
        %v358 = vsub.s32 %v355, %v357
        %v359 = vrot.slane %v345, %v358
        %v360 = vcombine.high %v352, %v352
        %v361 = vcombine.high %v359, %v359
        %v363 = vunpack.c.l.s4 1966171168
        %v364 = vunpack.c.0.s8 %v363
        %v365 = vlaneseq
        %v366 = vshrl.u32 %v365, 7
        %v367 = vsub.s32 %v364, %v366
        %v368 = vrot.slane %v352, %v367
        %v370 = vunpack.c.l.s4 1966171168
        %v371 = vunpack.c.0.s8 %v370
        %v372 = vlaneseq
        %v373 = vshrl.u32 %v372, 7
        %v374 = vsub.s32 %v371, %v373
        %v375 = vrot.slane %v359, %v374
        %v377 = vunpack.c.l.s4 1966171168
        %v378 = vunpack.c.0.s8 %v377
        %v379 = vlaneseq
        %v380 = vshrl.u32 %v379, 7
        %v381 = vsub.s32 %v378, %v380
        %v382 = vrot.slane %v360, %v381
        %v384 = vunpack.c.l.s4 1966171168
        %v385 = vunpack.c.0.s8 %v384
        %v386 = vlaneseq
        %v387 = vshrl.u32 %v386, 7
        %v388 = vsub.s32 %v385, %v387
        %v389 = vrot.slane %v361, %v388
        %v390 = vcombine.high %v368, %v368
        %v391 = vcombine.high %v375, %v375
        %v392 = vcombine.high %v382, %v382
        %v393 = vcombine.high %v389, %v389
        %v394 = vcombine.high %v342, %v342
        %v396 = vunpack.c.l.s4 1966171168
        %v397 = vunpack.c.0.s8 %v396
        %v398 = vlaneseq
        %v399 = vshrl.u32 %v398, 7
        %v400 = vsub.s32 %v397, %v399
        %v401 = vrot.slane %v342, %v400
        %v403 = vunpack.c.l.s4 1966171168
        %v404 = vunpack.c.0.s8 %v403
        %v405 = vlaneseq
        %v406 = vshrl.u32 %v405, 7
        %v407 = vsub.s32 %v404, %v406
        %v408 = vrot.slane %v394, %v407
        %v409 = vcombine.high %v401, %v401
        %v410 = vcombine.high %v408, %v408
        %v412 = vunpack.c.l.s4 1966171168
        %v413 = vunpack.c.0.s8 %v412
        %v414 = vlaneseq
        %v415 = vshrl.u32 %v414, 7
        %v416 = vsub.s32 %v413, %v415
        %v417 = vrot.slane %v401, %v416
        %v419 = vunpack.c.l.s4 1966171168
        %v420 = vunpack.c.0.s8 %v419
        %v421 = vlaneseq
        %v422 = vshrl.u32 %v421, 7
        %v423 = vsub.s32 %v420, %v422
        %v424 = vrot.slane %v408, %v423
        %v426 = vunpack.c.l.s4 1966171168
        %v427 = vunpack.c.0.s8 %v426
        %v428 = vlaneseq
        %v429 = vshrl.u32 %v428, 7
        %v430 = vsub.s32 %v427, %v429
        %v431 = vrot.slane %v409, %v430
        %v433 = vunpack.c.l.s4 1966171168
        %v434 = vunpack.c.0.s8 %v433
        %v435 = vlaneseq
        %v436 = vshrl.u32 %v435, 7
        %v437 = vsub.s32 %v434, %v436
        %v438 = vrot.slane %v410, %v437
        %v439 = vcombine.high %v417, %v417
        %v440 = vcombine.high %v424, %v424
        %v441 = vcombine.high %v431, %v431
        %v442 = vcombine.high %v438, %v438
        %v443 = vld [vmem:[%s322] sm:$0xff]
        %v444 = vld [vmem:[%s322 + $0x8] sm:$0xff]
        %v447 = vcombine.high %v443, %v443
        %v449 = vunpack.c.l.s4 1966171168
        %v450 = vunpack.c.0.s8 %v449
        %v451 = vlaneseq
        %v452 = vshrl.u32 %v451, 7
        %v453 = vsub.s32 %v450, %v452
        %v454 = vrot.slane %v443, %v453
        %v456 = vunpack.c.l.s4 1966171168
        %v457 = vunpack.c.0.s8 %v456
        %v458 = vlaneseq
        %v459 = vshrl.u32 %v458, 7
        %v460 = vsub.s32 %v457, %v459
        %v461 = vrot.slane %v447, %v460
        %v462 = vcombine.high %v454, %v454
        %v463 = vcombine.high %v461, %v461
        %v465 = vunpack.c.l.s4 1966171168
        %v466 = vunpack.c.0.s8 %v465
        %v467 = vlaneseq
        %v468 = vshrl.u32 %v467, 7
        %v469 = vsub.s32 %v466, %v468
        %v470 = vrot.slane %v454, %v469
        %v472 = vunpack.c.l.s4 1966171168
        %v473 = vunpack.c.0.s8 %v472
        %v474 = vlaneseq
        %v475 = vshrl.u32 %v474, 7
        %v476 = vsub.s32 %v473, %v475
        %v477 = vrot.slane %v461, %v476
        %v479 = vunpack.c.l.s4 1966171168
        %v480 = vunpack.c.0.s8 %v479
        %v481 = vlaneseq
        %v482 = vshrl.u32 %v481, 7
        %v483 = vsub.s32 %v480, %v482
        %v484 = vrot.slane %v462, %v483
        %v486 = vunpack.c.l.s4 1966171168
        %v487 = vunpack.c.0.s8 %v486
        %v488 = vlaneseq
        %v489 = vshrl.u32 %v488, 7
        %v490 = vsub.s32 %v487, %v489
        %v491 = vrot.slane %v463, %v490
        %v492 = vcombine.high %v470, %v470
        %v493 = vcombine.high %v477, %v477
        %v494 = vcombine.high %v484, %v484
        %v495 = vcombine.high %v491, %v491
        %v496 = vcombine.high %v444, %v444
        %v498 = vunpack.c.l.s4 1966171168
        %v499 = vunpack.c.0.s8 %v498
        %v500 = vlaneseq
        %v501 = vshrl.u32 %v500, 7
        %v502 = vsub.s32 %v499, %v501
        %v503 = vrot.slane %v444, %v502
        %v505 = vunpack.c.l.s4 1966171168
        %v506 = vunpack.c.0.s8 %v505
        %v507 = vlaneseq
        %v508 = vshrl.u32 %v507, 7
        %v509 = vsub.s32 %v506, %v508
        %v510 = vrot.slane %v496, %v509
        %v511 = vcombine.high %v503, %v503
        %v512 = vcombine.high %v510, %v510
        %v514 = vunpack.c.l.s4 1966171168
        %v515 = vunpack.c.0.s8 %v514
        %v516 = vlaneseq
        %v517 = vshrl.u32 %v516, 7
        %v518 = vsub.s32 %v515, %v517
        %v519 = vrot.slane %v503, %v518
        %v521 = vunpack.c.l.s4 1966171168
        %v522 = vunpack.c.0.s8 %v521
        %v523 = vlaneseq
        %v524 = vshrl.u32 %v523, 7
        %v525 = vsub.s32 %v522, %v524
        %v526 = vrot.slane %v510, %v525
        %v528 = vunpack.c.l.s4 1966171168
        %v529 = vunpack.c.0.s8 %v528
        %v530 = vlaneseq
        %v531 = vshrl.u32 %v530, 7
        %v532 = vsub.s32 %v529, %v531
        %v533 = vrot.slane %v511, %v532
        %v535 = vunpack.c.l.s4 1966171168
        %v536 = vunpack.c.0.s8 %v535
        %v537 = vlaneseq
        %v538 = vshrl.u32 %v537, 7
        %v539 = vsub.s32 %v536, %v538
        %v540 = vrot.slane %v512, %v539
        %v541 = vcombine.high %v519, %v519
        %v542 = vcombine.high %v526, %v526
        %v543 = vcombine.high %v533, %v533
        %v544 = vcombine.high %v540, %v540
        %545 = vrot.lane.b32.xlu0 %v325, 64
        %v546 = vpop.permute.xlu0 %545
        %547 = vrot.lane.b32.xlu0 %v326, 64
        %v548 = vpop.permute.xlu0 %547
        %549 = vrot.lane.b32.xlu0 %v327, 64
        %v550 = vpop.permute.xlu0 %549
        %551 = vrot.lane.b32.xlu0 %v328, 64
        %v552 = vpop.permute.xlu0 %551
        %553 = vrot.lane.b32.xlu0 %v329, 64
        %v554 = vpop.permute.xlu0 %553
        %555 = vrot.lane.b32.xlu0 %v330, 64
        %v556 = vpop.permute.xlu0 %555
        %557 = vrot.lane.b32.xlu0 %v331, 64
        %v558 = vpop.permute.xlu0 %557
        %559 = vrot.lane.b32.xlu0 %v332, 64
        %v560 = vpop.permute.xlu0 %559
        %561 = vrot.lane.b32.xlu0 %v333, 64
        %v562 = vpop.permute.xlu0 %561
        %563 = vrot.lane.b32.xlu0 %v334, 64
        %v564 = vpop.permute.xlu0 %563
        %565 = vrot.lane.b32.xlu0 %v335, 64
        %v566 = vpop.permute.xlu0 %565
        %567 = vrot.lane.b32.xlu0 %v336, 64
        %v568 = vpop.permute.xlu0 %567
        %569 = vrot.lane.b32.xlu0 %v337, 64
        %v570 = vpop.permute.xlu0 %569
        %571 = vrot.lane.b32.xlu0 %v338, 64
        %v572 = vpop.permute.xlu0 %571
        %573 = vrot.lane.b32.xlu0 %v339, 64
        %v574 = vpop.permute.xlu0 %573
        %575 = vrot.lane.b32.xlu0 %v340, 64
        %v576 = vpop.permute.xlu0 %575
        %v577 = vlaneseq
        %v578 = vshrl.u32 %v577, 7
        %v579 = vsub.s32 0, %v578
        %v580 = vrot.slane %v368, %v579
        %v581 = vlaneseq
        %v582 = vshrl.u32 %v581, 7
        %v583 = vsub.s32 0, %v582
        %v584 = vrot.slane %v382, %v583
        %v585 = vlaneseq
        %v586 = vshrl.u32 %v585, 7
        %v587 = vsub.s32 0, %v586
        %v588 = vrot.slane %v390, %v587
        %v589 = vlaneseq
        %v590 = vshrl.u32 %v589, 7
        %v591 = vsub.s32 0, %v590
        %v592 = vrot.slane %v392, %v591
        %v593 = vlaneseq
        %v594 = vshrl.u32 %v593, 7
        %v595 = vsub.s32 0, %v594
        %v596 = vrot.slane %v375, %v595
        %v597 = vlaneseq
        %v598 = vshrl.u32 %v597, 7
        %v599 = vsub.s32 0, %v598
        %v600 = vrot.slane %v389, %v599
        %v601 = vlaneseq
        %v602 = vshrl.u32 %v601, 7
        %v603 = vsub.s32 0, %v602
        %v604 = vrot.slane %v391, %v603
        %v605 = vlaneseq
        %v606 = vshrl.u32 %v605, 7
        %v607 = vsub.s32 0, %v606
        %v608 = vrot.slane %v393, %v607
        %v609 = vlaneseq
        %v610 = vshrl.u32 %v609, 7
        %v611 = vsub.s32 0, %v610
        %v612 = vrot.slane %v417, %v611
        %v613 = vlaneseq
        %v614 = vshrl.u32 %v613, 7
        %v615 = vsub.s32 0, %v614
        %v616 = vrot.slane %v431, %v615
        %v617 = vlaneseq
        %v618 = vshrl.u32 %v617, 7
        %v619 = vsub.s32 0, %v618
        %v620 = vrot.slane %v439, %v619
        %v621 = vlaneseq
        %v622 = vshrl.u32 %v621, 7
        %v623 = vsub.s32 0, %v622
        %v624 = vrot.slane %v441, %v623
        %v625 = vlaneseq
        %v626 = vshrl.u32 %v625, 7
        %v627 = vsub.s32 0, %v626
        %v628 = vrot.slane %v424, %v627
        %v629 = vlaneseq
        %v630 = vshrl.u32 %v629, 7
        %v631 = vsub.s32 0, %v630
        %v632 = vrot.slane %v438, %v631
        %v633 = vlaneseq
        %v634 = vshrl.u32 %v633, 7
        %v635 = vsub.s32 0, %v634
        %v636 = vrot.slane %v440, %v635
        %v637 = vlaneseq
        %v638 = vshrl.u32 %v637, 7
        %v639 = vsub.s32 0, %v638
        %v640 = vrot.slane %v442, %v639
        %v657 = vmul.f32 %v325, %v580
        %v658 = vmul.f32 %v326, %v584
        %v659 = vmul.f32 %v327, %v588
        %v660 = vmul.f32 %v328, %v592
        %v661 = vmul.f32 %v329, %v596
        %v662 = vmul.f32 %v330, %v600
        %v663 = vmul.f32 %v331, %v604
        %v664 = vmul.f32 %v332, %v608
        %v665 = vmul.f32 %v333, %v612
        %v666 = vmul.f32 %v334, %v616
        %v667 = vmul.f32 %v335, %v620
        %v668 = vmul.f32 %v336, %v624
        %v669 = vmul.f32 %v337, %v628
        %v670 = vmul.f32 %v338, %v632
        %v671 = vmul.f32 %v339, %v636
        %v672 = vmul.f32 %v340, %v640
        %v673 = vlaneseq
        %v674 = vshrl.u32 %v673, 7
        %v675 = vsub.s32 0, %v674
        %v676 = vrot.slane %v470, %v675
        %v677 = vlaneseq
        %v678 = vshrl.u32 %v677, 7
        %v679 = vsub.s32 0, %v678
        %v680 = vrot.slane %v484, %v679
        %v681 = vlaneseq
        %v682 = vshrl.u32 %v681, 7
        %v683 = vsub.s32 0, %v682
        %v684 = vrot.slane %v492, %v683
        %v685 = vlaneseq
        %v686 = vshrl.u32 %v685, 7
        %v687 = vsub.s32 0, %v686
        %v688 = vrot.slane %v494, %v687
        %v689 = vlaneseq
        %v690 = vshrl.u32 %v689, 7
        %v691 = vsub.s32 0, %v690
        %v692 = vrot.slane %v477, %v691
        %v693 = vlaneseq
        %v694 = vshrl.u32 %v693, 7
        %v695 = vsub.s32 0, %v694
        %v696 = vrot.slane %v491, %v695
        %v697 = vlaneseq
        %v698 = vshrl.u32 %v697, 7
        %v699 = vsub.s32 0, %v698
        %v700 = vrot.slane %v493, %v699
        %v701 = vlaneseq
        %v702 = vshrl.u32 %v701, 7
        %v703 = vsub.s32 0, %v702
        %v704 = vrot.slane %v495, %v703
        %v705 = vlaneseq
        %v706 = vshrl.u32 %v705, 7
        %v707 = vsub.s32 0, %v706
        %v708 = vrot.slane %v519, %v707
        %v709 = vlaneseq
        %v710 = vshrl.u32 %v709, 7
        %v711 = vsub.s32 0, %v710
        %v712 = vrot.slane %v533, %v711
        %v713 = vlaneseq
        %v714 = vshrl.u32 %v713, 7
        %v715 = vsub.s32 0, %v714
        %v716 = vrot.slane %v541, %v715
        %v717 = vlaneseq
        %v718 = vshrl.u32 %v717, 7
        %v719 = vsub.s32 0, %v718
        %v720 = vrot.slane %v543, %v719
        %v721 = vlaneseq
        %v722 = vshrl.u32 %v721, 7
        %v723 = vsub.s32 0, %v722
        %v724 = vrot.slane %v526, %v723
        %v725 = vlaneseq
        %v726 = vshrl.u32 %v725, 7
        %v727 = vsub.s32 0, %v726
        %v728 = vrot.slane %v540, %v727
        %v729 = vlaneseq
        %v730 = vshrl.u32 %v729, 7
        %v731 = vsub.s32 0, %v730
        %v732 = vrot.slane %v542, %v731
        %v733 = vlaneseq
        %v734 = vshrl.u32 %v733, 7
        %v735 = vsub.s32 0, %v734
        %v736 = vrot.slane %v544, %v735
        %v753 = vmul.f32 %v546, %v676
        %v754 = vmul.f32 %v548, %v680
        %v755 = vmul.f32 %v550, %v684
        %v756 = vmul.f32 %v552, %v688
        %v757 = vmul.f32 %v554, %v692
        %v758 = vmul.f32 %v556, %v696
        %v759 = vmul.f32 %v558, %v700
        %v760 = vmul.f32 %v560, %v704
        %v761 = vmul.f32 %v562, %v708
        %v762 = vmul.f32 %v564, %v712
        %v763 = vmul.f32 %v566, %v716
        %v764 = vmul.f32 %v568, %v720
        %v765 = vmul.f32 %v570, %v724
        %v766 = vmul.f32 %v572, %v728
        %v767 = vmul.f32 %v574, %v732
        %v768 = vmul.f32 %v576, %v736
        %v769 = vadd.f32 %v657, %v753
        %v770 = vadd.f32 %v658, %v754
        %v771 = vadd.f32 %v659, %v755
        %v772 = vadd.f32 %v660, %v756
        %v773 = vadd.f32 %v661, %v757
        %v774 = vadd.f32 %v662, %v758
        %v775 = vadd.f32 %v663, %v759
        %v776 = vadd.f32 %v664, %v760
        %v777 = vadd.f32 %v665, %v761
        %v778 = vadd.f32 %v666, %v762
        %v779 = vadd.f32 %v667, %v763
        %v780 = vadd.f32 %v668, %v764
        %v781 = vadd.f32 %v669, %v765
        %v782 = vadd.f32 %v670, %v766
        %v783 = vadd.f32 %v671, %v767
        %v784 = vadd.f32 %v672, %v768
        %785 = vst [vmem:[%s310] sm:$0xff] %v769
        %786 = vst [vmem:[%s310 + $0x8] sm:$0xff] %v770
        %787 = vst [vmem:[%s310 + $0x10] sm:$0xff] %v771
        %788 = vst [vmem:[%s310 + $0x18] sm:$0xff] %v772
        %789 = vst [vmem:[%s310 + $0x20] sm:$0xff] %v773
        %790 = vst [vmem:[%s310 + $0x28] sm:$0xff] %v774
        %791 = vst [vmem:[%s310 + $0x30] sm:$0xff] %v775
        %792 = vst [vmem:[%s310 + $0x38] sm:$0xff] %v776
        %793 = vst [vmem:[%s310 + $0x40] sm:$0xff] %v777
        %794 = vst [vmem:[%s310 + $0x48] sm:$0xff] %v778
        %795 = vst [vmem:[%s310 + $0x50] sm:$0xff] %v779
        %796 = vst [vmem:[%s310 + $0x58] sm:$0xff] %v780
        %797 = vst [vmem:[%s310 + $0x60] sm:$0xff] %v781
        %798 = vst [vmem:[%s310 + $0x68] sm:$0xff] %v782
        %799 = vst [vmem:[%s310 + $0x70] sm:$0xff] %v783
        %800 = vst [vmem:[%s310 + $0x78] sm:$0xff] %v784
        %s801 = sand.u32 %s116, 1
        %s802 = sand.u32 %s116, 1
        %s803 = smul.addr %s802, 128
        %s804 = scalar_lea.vmem [#allocation3], %s803
        // Predicated region
        $region71: #{tpu_custom_call.1} parent=65 // pred_check
          %p805 = pneg %p126
        $region72: #{tpu_custom_call.1} parent=65 // pred_check_branch
          %807 = sbr.rel (%p805) target = $region74
        $region73: #{tpu_custom_call.1} parent=65 // pred_region
          %s808 = smul.u32 16, %s18
          %s809 = smul.addr %s808, 2
          %s810 = smul.addr %s19, 32
          %s811 = sadd.s32 %s809, %s810
          %s812 = smul.addr %s811, 8
          %s813 = scalar_lea.vmem %s3, %s812
          // Predicated region
          $region75: #{tpu_custom_call.1} parent=73 // pred_check
            _
          $region76: #{tpu_custom_call.1} parent=73 // pred_check_branch
            %815 = sbr.rel (0) target = $region78
          $region77: #{tpu_custom_call.1} parent=73 // pred_region
            // Predicated region
            $region79: #{tpu_custom_call.1} parent=77 // pred_check
              _
            $region80: #{tpu_custom_call.1} parent=77 // pred_check_branch
              %817 = sbr.rel (0) target = $region82
            $region81: #{tpu_custom_call.1} parent=77 // pred_region
              // Predicated region
              $region94: #{tpu_custom_call.1} parent=81 // pred_check
                _
              $region95: #{tpu_custom_call.1} parent=81 // pred_check_branch
                %862 = sbr.rel (0) target = $region97
              $region96: #{tpu_custom_call.1} parent=81 // pred_region
                loop: start=0, step=1, limit=1
                $region98: #{tpu_custom_call.1} parent=96 // loop_pre_header
                  _
                $region99: #{tpu_custom_call.1} parent=96 // loop_header
                  %s864 = sphi 0, %s868
                  %p865 = scmp.ge.s32.totalorder %s864, 1
                  %s869 = sphi %s804, %s804
                  %s870 = sphi %s813, %s813
                $region100: #{tpu_custom_call.1} parent=96 // loop_header_branch
                  %867 = sbr.rel (%p865) target = $region104
                $region101: #{tpu_custom_call.1} parent=96 // loop_body
                  %v871 = vld [vmem:[%s869] sm:$0xff]
                  %872 = vst [vmem:[%s870] sm:$0xff] %v871
                  %v873 = vld [vmem:[%s869 + $0x8] sm:$0xff]
                  %874 = vst [vmem:[%s870 + $0x10] sm:$0xff] %v873
                  %v875 = vld [vmem:[%s869 + $0x10] sm:$0xff]
                  %876 = vst [vmem:[%s870 + $0x20] sm:$0xff] %v875
                  %v877 = vld [vmem:[%s869 + $0x18] sm:$0xff]
                  %878 = vst [vmem:[%s870 + $0x30] sm:$0xff] %v877
                  %v879 = vld [vmem:[%s869 + $0x20] sm:$0xff]
                  %880 = vst [vmem:[%s870 + $0x40] sm:$0xff] %v879
                  %v881 = vld [vmem:[%s869 + $0x28] sm:$0xff]
                  %882 = vst [vmem:[%s870 + $0x50] sm:$0xff] %v881
                  %v883 = vld [vmem:[%s869 + $0x30] sm:$0xff]
                  %884 = vst [vmem:[%s870 + $0x60] sm:$0xff] %v883
                  %v885 = vld [vmem:[%s869 + $0x38] sm:$0xff]
                  %886 = vst [vmem:[%s870 + $0x70] sm:$0xff] %v885
                  %v887 = vld [vmem:[%s869 + $0x40] sm:$0xff]
                  %888 = vst [vmem:[%s870 + $0x80] sm:$0xff] %v887
                  %v889 = vld [vmem:[%s869 + $0x48] sm:$0xff]
                  %890 = vst [vmem:[%s870 + $0x90] sm:$0xff] %v889
                  %v891 = vld [vmem:[%s869 + $0x50] sm:$0xff]
                  %892 = vst [vmem:[%s870 + $0xa0] sm:$0xff] %v891
                  %v893 = vld [vmem:[%s869 + $0x58] sm:$0xff]
                  %894 = vst [vmem:[%s870 + $0xb0] sm:$0xff] %v893
                  %v895 = vld [vmem:[%s869 + $0x60] sm:$0xff]
                  %896 = vst [vmem:[%s870 + $0xc0] sm:$0xff] %v895
                  %v897 = vld [vmem:[%s869 + $0x68] sm:$0xff]
                  %898 = vst [vmem:[%s870 + $0xd0] sm:$0xff] %v897
                  %v899 = vld [vmem:[%s869 + $0x70] sm:$0xff]
                  %900 = vst [vmem:[%s870 + $0xe0] sm:$0xff] %v899
                  %v901 = vld [vmem:[%s869 + $0x78] sm:$0xff]
                  %902 = vst [vmem:[%s870 + $0xf0] sm:$0xff] %v901
                $region102: #{tpu_custom_call.1} parent=96 // loop_footer
                  %s868 = sadd.s32 1, %s864
                $region103: #{tpu_custom_call.1} parent=96 // loop_footer_branch
                  %863 = sbr.rel target = $region99
                $region104: #{tpu_custom_call.1} parent=96 // loop_exit
                  _
              $region97: #{tpu_custom_call.1} parent=81 // pred_fallthru
                _
              // Predicated region
              $region105: #{tpu_custom_call.1} parent=81 // pred_check
                _
              $region106: #{tpu_custom_call.1} parent=81 // pred_check_branch
                %904 = sbr.rel target = $region108
              $region107: #{tpu_custom_call.1} parent=81 // pred_region
                _
              $region108: #{tpu_custom_call.1} parent=81 // pred_fallthru
                _
            $region82: #{tpu_custom_call.1} parent=77 // pred_fallthru
              _
            // Predicated region
            $region83: #{tpu_custom_call.1} parent=77 // pred_check
              _
            $region84: #{tpu_custom_call.1} parent=77 // pred_check_branch
              %819 = sbr.rel target = $region86
            $region85: #{tpu_custom_call.1} parent=77 // pred_region
              loop: start=0, step=1, limit=1
              $region87: #{tpu_custom_call.1} parent=85 // loop_pre_header
                _
              $region88: #{tpu_custom_call.1} parent=85 // loop_header
                %s822 = sphi 0, %s826
                %p823 = scmp.ge.s32.totalorder %s822, 1
                %s827 = sphi %s804, %s804
                %s828 = sphi %s813, %s813
              $region89: #{tpu_custom_call.1} parent=85 // loop_header_branch
                %825 = sbr.rel (%p823) target = $region93
              $region90: #{tpu_custom_call.1} parent=85 // loop_body
                %v829 = vld [vmem:[%s827] sm:$0xff]
                %830 = vst [vmem:[%s828] sm:$0xff] %v829
                %v831 = vld [vmem:[%s827 + $0x8] sm:$0xff]
                %832 = vst [vmem:[%s828 + $0x10] sm:$0xff] %v831
                %v833 = vld [vmem:[%s827 + $0x10] sm:$0xff]
                %834 = vst [vmem:[%s828 + $0x20] sm:$0xff] %v833
                %v835 = vld [vmem:[%s827 + $0x18] sm:$0xff]
                %836 = vst [vmem:[%s828 + $0x30] sm:$0xff] %v835
                %v837 = vld [vmem:[%s827 + $0x20] sm:$0xff]
                %838 = vst [vmem:[%s828 + $0x40] sm:$0xff] %v837
                %v839 = vld [vmem:[%s827 + $0x28] sm:$0xff]
                %840 = vst [vmem:[%s828 + $0x50] sm:$0xff] %v839
                %v841 = vld [vmem:[%s827 + $0x30] sm:$0xff]
                %842 = vst [vmem:[%s828 + $0x60] sm:$0xff] %v841
                %v843 = vld [vmem:[%s827 + $0x38] sm:$0xff]
                %844 = vst [vmem:[%s828 + $0x70] sm:$0xff] %v843
                %v845 = vld [vmem:[%s827 + $0x40] sm:$0xff]
                %846 = vst [vmem:[%s828 + $0x80] sm:$0xff] %v845
                %v847 = vld [vmem:[%s827 + $0x48] sm:$0xff]
                %848 = vst [vmem:[%s828 + $0x90] sm:$0xff] %v847
                %v849 = vld [vmem:[%s827 + $0x50] sm:$0xff]
                %850 = vst [vmem:[%s828 + $0xa0] sm:$0xff] %v849
                %v851 = vld [vmem:[%s827 + $0x58] sm:$0xff]
                %852 = vst [vmem:[%s828 + $0xb0] sm:$0xff] %v851
                %v853 = vld [vmem:[%s827 + $0x60] sm:$0xff]
                %854 = vst [vmem:[%s828 + $0xc0] sm:$0xff] %v853
                %v855 = vld [vmem:[%s827 + $0x68] sm:$0xff]
                %856 = vst [vmem:[%s828 + $0xd0] sm:$0xff] %v855
                %v857 = vld [vmem:[%s827 + $0x70] sm:$0xff]
                %858 = vst [vmem:[%s828 + $0xe0] sm:$0xff] %v857
                %v859 = vld [vmem:[%s827 + $0x78] sm:$0xff]
                %860 = vst [vmem:[%s828 + $0xf0] sm:$0xff] %v859
              $region91: #{tpu_custom_call.1} parent=85 // loop_footer
                %s826 = sadd.s32 1, %s822
              $region92: #{tpu_custom_call.1} parent=85 // loop_footer_branch
                %821 = sbr.rel target = $region88
              $region93: #{tpu_custom_call.1} parent=85 // loop_exit
                _
            $region86: #{tpu_custom_call.1} parent=77 // pred_fallthru
              _
          $region78: #{tpu_custom_call.1} parent=73 // pred_fallthru
            _
          %905 = vnop
        $region74: #{tpu_custom_call.1} parent=65 // pred_fallthru
          _
      $region66: #{tpu_custom_call.1} parent=5 // pred_fallthru
        _
      %p906 = scmp.le.s32.totalorder 2, %s9
      // Predicated region
      $region109: #{tpu_custom_call.1} parent=5 // pred_check
        %p907 = pneg %p906
      $region110: #{tpu_custom_call.1} parent=5 // pred_check_branch
        %909 = sbr.rel (%p907) target = $region112
      $region111: #{tpu_custom_call.1} parent=5 // pred_region
        %s910 = ssub.s32 %s9, 2
        // Predicated region
        $region113: #{tpu_custom_call.1} parent=111 // pred_check
          %p911 = pneg %p132
        $region114: #{tpu_custom_call.1} parent=111 // pred_check_branch
          %913 = sbr.rel (%p911) target = $region116
        $region115: #{tpu_custom_call.1} parent=111 // pred_region
          %s914 = sand.u32 %s117, 1
          %s915 = sand.u32 %s117, 1
          %s916 = smul.addr %s915, 128
          %s917 = scalar_lea.vmem [#allocation3], %s916
        $region116: #{tpu_custom_call.1} parent=111 // pred_fallthru
          _
      $region112: #{tpu_custom_call.1} parent=5 // pred_fallthru
        _
    $region6: #{tpu_custom_call.1} parent=1 // loop_footer
      %s13 = sadd.s32 1, %s9
    $region7: #{tpu_custom_call.1} parent=1 // loop_footer_branch
      %8 = sbr.rel target = $region3
    $region8: #{tpu_custom_call.1} parent=1 // loop_exit
      _

</llo_original>
